<compile_context>
chip_gen: v7x
topology: tpu7x:2x2x1
jax: 0.10.0
libtpu: 0.0.40
codegen_flags: <defaults>
</compile_context>

<pallas_src>
import jax
import jax.numpy as jnp
import numpy as np
from jax.experimental import pallas as pl
from jax.experimental.pallas import tpu as pltpu

EMBED_SIZE = 6
FF_HIDDEN_SIZE = 24

_LANE = 128
_SUBLANE_F32 = 8
_SUBLANE_BF16 = 16


# ----------------------------------------------------------------------------
# Small helpers
# ----------------------------------------------------------------------------
def _cdiv(a, b):
    return (a + b - 1) // b


def _round_up(x, mult):
    return _cdiv(x, mult) * mult


def _pad_to(a, shape):
    if tuple(a.shape) == tuple(shape):
        return a
    pads = [(0, t - s) for s, t in zip(a.shape, shape)]
    return jnp.pad(a, pads)


def _vmem_capacity_bytes():
    """Physical per-core VMEM, with a conservative fallback (v7x = 64 MiB)."""
    try:
        info = pltpu.get_tpu_info()
        cap = getattr(info, "vmem_capacity_bytes", None)
        if cap:
            return int(cap)
    except Exception:
        pass
    return 64 * 1024 * 1024


def _choose_tm(m, tm_max, sublane):
    """M tile: multiple of `sublane`, and >= 2 tiles whenever M allows it so
    the parallel grid axis keeps both v7x TensorCores busy."""
    if m <= sublane:
        return sublane
    tm = min(tm_max, _round_up(_cdiv(m, 2), sublane))
    return max(tm, sublane)


# ----------------------------------------------------------------------------
# Kernels
# ----------------------------------------------------------------------------
def _ffn_resident_kernel(x_ref, w1_ref, b1_ref, w2_ref, b2_ref, o_ref):
    """Whole hidden dim in one shot; weights resident across the grid.
    No accumulator scratch, no init/finalize branches."""
    h = jnp.dot(x_ref[...], w1_ref[...], preferred_element_type=jnp.float32)
    h = jnp.maximum(h + b1_ref[...], 0.0)
    out = jnp.dot(h.astype(w2_ref.dtype), w2_ref[...],
                  preferred_element_type=jnp.float32)
    o_ref[...] = (out + b2_ref[...]).astype(o_ref.dtype)


def _ffn_ktiled_kernel(x_ref, w1_ref, b1_ref, w2_ref, b2_ref, o_ref, acc_ref):
    """H (reduction) tiled on grid axis 1; f32 accumulator resident over k."""
    k = pl.program_id(1)

    @pl.when(k == 0)
    def _():
        acc_ref[...] = jnp.zeros_like(acc_ref)

    h = jnp.dot(x_ref[...], w1_ref[...], preferred_element_type=jnp.float32)
    h = jnp.maximum(h + b1_ref[...], 0.0)
    acc_ref[...] += jnp.dot(h.astype(w2_ref.dtype), w2_ref[...],
                            preferred_element_type=jnp.float32)

    @pl.when(k == pl.num_programs(1) - 1)
    def _():
        o_ref[...] = (acc_ref[...] + b2_ref[...]).astype(o_ref.dtype)


# ----------------------------------------------------------------------------
# Parameter preparation (one-time, outside the hot path)
# ----------------------------------------------------------------------------
def prepare_ffn_params(w1, b1, w2, b2, *, mxu_dtype=jnp.bfloat16):
    """torch.nn.Linear layout: w1 (H, E), b1 (H,), w2 (E, H), b2 (E,).

    Produces both:
      * transposed, true-shape f32 copies for the small / unpadded path, and
      * lane-padded `mxu_dtype` weights (+ f32 biases) for the tiled path.
        Zero padding keeps the math exact: relu(0) = 0 in padded H lanes and
        zero-padded W2 columns / b2 give zero padded output columns.
    """
    hidden, embed = w1.shape
    e_pad = _round_up(embed, _LANE)
    h_pad = _round_up(hidden, _LANE)

    w1t = jnp.asarray(w1, jnp.float32).T            # (E, H)
    w2t = jnp.asarray(w2, jnp.float32).T            # (H, E)
    b1r = jnp.asarray(b1, jnp.float32).reshape(1, hidden)
    b2r = jnp.asarray(b2, jnp.float32).reshape(1, embed)

    return {
        "embed": embed, "hidden": hidden, "e_pad": e_pad, "h_pad": h_pad,
        "mxu_dtype": mxu_dtype,
        # small / unpadded path (f32, true dims)
        "w1t": w1t, "b1": b1r, "w2t": w2t, "b2": b2r,
        # tiled path (lane-padded; weights in bf16 for MXU, biases f32)
        "w1t_p": _pad_to(w1t, (e_pad, h_pad)).astype(mxu_dtype),
        "b1_p": _pad_to(b1r, (1, h_pad)),
        "w2t_p": _pad_to(w2t, (h_pad, e_pad)).astype(mxu_dtype),
        "b2_p": _pad_to(b2r, (1, e_pad)),
    }


# ----------------------------------------------------------------------------
# Path A: small / unpadded fused kernel (the module's real sizes land here)
# ----------------------------------------------------------------------------
def _ffn_small(x2d, params, *, tm=512):
    m, embed = x2d.shape
    hidden = params["hidden"]

    tm = _choose_tm(m, tm, _SUBLANE_F32)
    m_pad = _round_up(m, tm)
    xp = _pad_to(x2d, (m_pad, embed))               # pad M only (cheap)

    out = pl.pallas_call(
        _ffn_resident_kernel,
        out_shape=jax.ShapeDtypeStruct((m_pad, embed), x2d.dtype),
        grid_spec=pltpu.PrefetchScalarGridSpec(
            num_scalar_prefetch=0,
            grid=(m_pad // tm,),
            in_specs=[
                # Activations stream over M with their TRUE last dim: no lane
                # padding / HBM amplification (block last dim == full array
                # dim, so the (8,128) divisibility rule does not apply).
                pl.BlockSpec((tm, embed), lambda i: (i, 0)),
                # Weights / biases: constant index_map -> DMA'd once, resident.
                pl.BlockSpec((embed, hidden), lambda i: (0, 0)),
                pl.BlockSpec((1, hidden), lambda i: (0, 0)),
                pl.BlockSpec((hidden, embed), lambda i: (0, 0)),
                pl.BlockSpec((1, embed), lambda i: (0, 0)),
            ],
            out_specs=pl.BlockSpec((tm, embed), lambda i: (i, 0)),
        ),
        compiler_params=pltpu.CompilerParams(
            dimension_semantics=("parallel",),
        ),
    )(xp, params["w1t"], params["b1"], params["w2t"], params["b2"])

    return out[:m]


# ----------------------------------------------------------------------------
# Path B: tiled bf16 kernel for lane-sized E / H (hundreds+)
# ----------------------------------------------------------------------------
def _ffn_tiled(x2d, params, *, tm=None, th=None):
    m, embed = x2d.shape
    e_pad, h_pad = params["e_pad"], params["h_pad"]
    mxu_dtype = params["mxu_dtype"]
    out_dtype = x2d.dtype

    # Generation-aware VMEM request: never the full physical VMEM.
    cap = _vmem_capacity_bytes()
    vmem_limit = (cap * 3) // 4                     # 48 MiB v7x, 96 MiB v5e/v6e
    budget = int(vmem_limit * 0.8)                  # headroom under the limit

    w_bytes = np.dtype(mxu_dtype).itemsize
    o_bytes = np.dtype(out_dtype).itemsize

    def footprint(tm_, th_):
        resident = th_ == h_pad
        wbuf = 1 if resident else 2                 # streamed weights: 2 bufs
        weights = 2 * e_pad * th_ * w_bytes * wbuf
        biases = (th_ + e_pad) * 4 * wbuf
        xblk = tm_ * e_pad * w_bytes * 2
        oblk = tm_ * e_pad * o_bytes * 2
        h_tmp = tm_ * th_ * 4                       # f32 hidden intermediate
        acc = 0 if resident else tm_ * e_pad * 4
        return weights + biases + xblk + oblk + h_tmp + acc

    # M tile: multiple of 16 (bf16 sublane packing); large default so weight
    # re-streaming (if any) is amortised; >= 2 tiles when M allows (megacore).
    tm = _choose_tm(m, 512 if tm is None else tm, _SUBLANE_BF16)

    if th is None:
        # Prefer fully VMEM-resident weights (DMA'd exactly once for the whole
        # grid); otherwise pick the largest 128-multiple divisor of H that fits.
        cands = [d for d in range(h_pad, 0, -_LANE) if h_pad % d == 0]
        th = next((d for d in cands if footprint(tm, d) <= budget), _LANE)
    assert h_pad % th == 0, "H tile must divide the padded hidden size"

    m_pad = _round_up(m, tm)
    # NOTE: the E pad below is a no-op whenever the producer supplies a
    # lane-aligned embed dim (the recommended layout for this path); tiny-E
    # problems are routed to the unpadded small path instead.
    xp = _pad_to(x2d, (m_pad, e_pad)).astype(mxu_dtype)

    num_m = m_pad // tm
    out_shape = jax.ShapeDtypeStruct((m_pad, e_pad), out_dtype)

    if th == h_pad:
        # Weights fully resident: 1-D grid, no reduction axis, no accumulator.
        out = pl.pallas_call(
            _ffn_resident_kernel,
            out_shape=out_shape,
            grid_spec=pltpu.PrefetchScalarGridSpec(
                num_scalar_prefetch=0,
                grid=(num_m,),
                in_specs=[
                    pl.BlockSpec((tm, e_pad), lambda i: (i, 0)),
                    pl.BlockSpec((e_pad, h_pad), lambda i: (0, 0)),
                    pl.BlockSpec((1, h_pad), lambda i: (0, 0)),
                    pl.BlockSpec((h_pad, e_pad), lambda i: (0, 0)),
                    pl.BlockSpec((1, e_pad), lambda i: (0, 0)),
                ],
                out_specs=pl.BlockSpec((tm, e_pad), lambda i: (i, 0)),
            ),
            compiler_params=pltpu.CompilerParams(
                dimension_semantics=("parallel",),
                vmem_limit_bytes=vmem_limit,
            ),
        )(xp, params["w1t_p"], params["b1_p"], params["w2t_p"], params["b2_p"])
    else:
        # H-tiled reduction: f32 accumulator resident over k, output written
        # on the last k step.
        out = pl.pallas_call(
            _ffn_ktiled_kernel,
            out_shape=out_shape,
            grid_spec=pltpu.PrefetchScalarGridSpec(
                num_scalar_prefetch=0,
                grid=(num_m, h_pad // th),
                in_specs=[
                    pl.BlockSpec((tm, e_pad), lambda i, k: (i, 0)),
                    pl.BlockSpec((e_pad, th), lambda i, k: (0, k)),
                    pl.BlockSpec((1, th), lambda i, k: (0, k)),
                    pl.BlockSpec((th, e_pad), lambda i, k: (k, 0)),
                    pl.BlockSpec((1, e_pad), lambda i, k: (0, 0)),
                ],
                out_specs=pl.BlockSpec((tm, e_pad), lambda i, k: (i, 0)),
                scratch_shapes=[pltpu.VMEM((tm, e_pad), jnp.float32)],
            ),
            compiler_params=pltpu.CompilerParams(
                dimension_semantics=("parallel", "arbitrary"),
                vmem_limit_bytes=vmem_limit,
            ),
        )(xp, params["w1t_p"], params["b1_p"], params["w2t_p"], params["b2_p"])

    return out[:m, :embed]


# ----------------------------------------------------------------------------
# Public entry point
# ----------------------------------------------------------------------------
def feed_forward_network(x, params, *, tm=None, th=None, force_path=None):
    """x: (batch, seq, embed); params from prepare_ffn_params()."""
    batch, seq, embed = x.shape
    assert embed == params["embed"]
    m = batch * seq
    x2d = x.reshape(m, embed)

    if force_path == "small":
        small = True
    elif force_path == "tiled":
        small = False
    else:
        # The tiled / bf16 path only pays off when E and H are lane-sized;
        # for the module's real E=6 / H=24 the unpadded fused kernel wins.
        small = params["embed"] < _LANE or params["hidden"] < _LANE

    if small:
        out2d = _ffn_small(x2d, params, tm=512 if tm is None else tm)
    else:
        out2d = _ffn_tiled(x2d, params, tm=tm, th=th)
    return out2d.reshape(batch, seq, embed)


def _init_params(key, embed, hidden):
    # Deterministic init mimicking nn.Linear's uniform(-1/sqrt(fan_in), +).
    k1, k2, k3, k4 = jax.random.split(key, 4)
    bound1 = 1.0 / jnp.sqrt(embed)
    bound2 = 1.0 / jnp.sqrt(hidden)
    w1 = jax.random.uniform(k1, (hidden, embed), jnp.float32, -bound1, bound1)
    b1 = jax.random.uniform(k2, (hidden,), jnp.float32, -bound1, bound1)
    w2 = jax.random.uniform(k3, (embed, hidden), jnp.float32, -bound2, bound2)
    b2 = jax.random.uniform(k4, (embed,), jnp.float32, -bound2, bound2)
    return w1, b1, w2, b2


if __name__ == "__main__":
    key = jax.random.PRNGKey(0)
    kx, kp, kx2, kp2 = jax.random.split(key, 4)

    # --- 1. Module-spec sizes (E=6, H=24): small unpadded fused kernel ------
    batch, seq = 2, 8
    x = jax.random.normal(kx, (batch, seq, EMBED_SIZE), jnp.float32)
    w1, b1, w2, b2 = _init_params(kp, EMBED_SIZE, FF_HIDDEN_SIZE)
    params = prepare_ffn_params(w1, b1, w2, b2)

    out = jax.block_until_ready(feed_forward_network(x, params))
    ref = jnp.maximum(x @ w1.T + b1, 0.0) @ w2.T + b2
    assert out.shape == (batch, seq, EMBED_SIZE)
    assert jnp.allclose(out, ref, atol=1e-5, rtol=1e-5)

    # --- 2. Lane-sized FFN: tiled bf16 path, fully VMEM-resident weights ----
    E2, H2 = 256, 512
    batch2, seq2 = 2, 128
    x2 = jax.random.normal(kx2, (batch2, seq2, E2), jnp.float32)
    w1b, b1b, w2b, b2b = _init_params(kp2, E2, H2)
    params2 = prepare_ffn_params(w1b, b1b, w2b, b2b)

    out2 = jax.block_until_ready(
        feed_forward_network(x2, params2, force_path="tiled"))
    ref2 = jnp.maximum(x2 @ w1b.T + b1b, 0.0) @ w2b.T + b2b
    assert jnp.allclose(out2, ref2, atol=5e-2, rtol=5e-2)

    # --- 3. Same sizes, forced H-tiled reduction (accumulator path) ---------
    out3 = jax.block_until_ready(
        feed_forward_network(x2, params2, force_path="tiled", th=256))
    assert jnp.allclose(out3, ref2, atol=5e-2, rtol=5e-2)

    print("KERNEL_OK")
</pallas_src>

<mosaic_0001>
module attributes {stable_mosaic.version = 11 : i64} {
  func.func @_ffn_resident_kernel(%arg0: i32, %arg1: memref<8x6xf32, #tpu.memory_space<vmem>>, %arg2: memref<6x24xf32, #tpu.memory_space<vmem>>, %arg3: memref<1x24xf32, #tpu.memory_space<vmem>>, %arg4: memref<24x6xf32, #tpu.memory_space<vmem>>, %arg5: memref<1x6xf32, #tpu.memory_space<vmem>>, %arg6: memref<8x6xf32, #tpu.memory_space<vmem>>) attributes {dimension_semantics = [#tpu.dimension_semantics<parallel>], iteration_bounds = array<i64: 2>, scalar_prefetch = 0 : i64, scratch_operands = 0 : i64, tpu.core_type = #tpu.core_type<tc>, window_params = [{transform_indices = @transform_0, window_bounds = array<i64: 8, 6>}, {pipeline_mode = #tpu.pipeline_mode<synchronous>, transform_indices = @transform_1, window_bounds = array<i64: 6, 24>}, {pipeline_mode = #tpu.pipeline_mode<synchronous>, transform_indices = @transform_2, window_bounds = array<i64: 1, 24>}, {pipeline_mode = #tpu.pipeline_mode<synchronous>, transform_indices = @transform_3, window_bounds = array<i64: 24, 6>}, {pipeline_mode = #tpu.pipeline_mode<synchronous>, transform_indices = @transform_4, window_bounds = array<i64: 1, 6>}, {transform_indices = @transform_5, window_bounds = array<i64: 8, 6>}]} {
    %c0 = arith.constant 0 : index
    %c0_0 = arith.constant 0 : index
    %0 = vector.load %arg1[%c0, %c0_0] : memref<8x6xf32, #tpu.memory_space<vmem>>, vector<8x6xf32>
    %c0_1 = arith.constant 0 : index
    %c0_2 = arith.constant 0 : index
    %1 = vector.load %arg2[%c0_1, %c0_2] : memref<6x24xf32, #tpu.memory_space<vmem>>, vector<6x24xf32>
    %cst = arith.constant dense<0.000000e+00> : vector<8x24xf32>
    %2 = tpu.matmul %0, %1, %cst {dimension_numbers = #tpu.dot_dimension_numbers<[1], [0], [0], [1], [0, 0, 1, 1], [], []>} : vector<8x6xf32>, vector<6x24xf32>, vector<8x24xf32> -> vector<8x24xf32>
    %c0_3 = arith.constant 0 : index
    %c0_4 = arith.constant 0 : index
    %3 = vector.load %arg3[%c0_3, %c0_4] : memref<1x24xf32, #tpu.memory_space<vmem>>, vector<1x24xf32>
    %4 = vector.broadcast %3 : vector<1x24xf32> to vector<8x24xf32>
    %5 = arith.addf %2, %4 : vector<8x24xf32>
    %cst_5 = arith.constant 0.000000e+00 : f32
    %6 = vector.broadcast %cst_5 : f32 to vector<8x24xf32>
    %7 = arith.maximumf %5, %6 : vector<8x24xf32>
    %c0_6 = arith.constant 0 : index
    %c0_7 = arith.constant 0 : index
    %8 = vector.load %arg4[%c0_6, %c0_7] : memref<24x6xf32, #tpu.memory_space<vmem>>, vector<24x6xf32>
    %cst_8 = arith.constant dense<0.000000e+00> : vector<8x6xf32>
    %9 = tpu.matmul %7, %8, %cst_8 {dimension_numbers = #tpu.dot_dimension_numbers<[1], [0], [0], [1], [0, 0, 1, 1], [], []>} : vector<8x24xf32>, vector<24x6xf32>, vector<8x6xf32> -> vector<8x6xf32>
    %c0_9 = arith.constant 0 : index
    %c0_10 = arith.constant 0 : index
    %10 = vector.load %arg5[%c0_9, %c0_10] : memref<1x6xf32, #tpu.memory_space<vmem>>, vector<1x6xf32>
    %11 = vector.broadcast %10 : vector<1x6xf32> to vector<8x6xf32>
    %12 = arith.addf %9, %11 : vector<8x6xf32>
    %c0_11 = arith.constant 0 : index
    %c0_12 = arith.constant 0 : index
    %13 = vector.load %arg6[%c0_11, %c0_12] : memref<8x6xf32, #tpu.memory_space<vmem>>, vector<8x6xf32>
    tpu.vector_store %arg6[%c0_11, %c0_12], %12 {strides = array<i32>} : memref<8x6xf32, #tpu.memory_space<vmem>>, vector<8x6xf32>,
    return
  }
  func.func @transform_0(%arg0: i32) -> (i32, i32) {
    %c0_i32 = arith.constant 0 : i32
    %c0_i32_0 = arith.constant 0 : i32
    return %arg0, %c0_i32 : i32, i32
  }
  func.func @transform_1(%arg0: i32) -> (i32, i32) {
    %c0_i32 = arith.constant 0 : i32
    %c0_i32_0 = arith.constant 0 : i32
    %c0_i32_1 = arith.constant 0 : i32
    return %c0_i32, %c0_i32_0 : i32, i32
  }
  func.func @transform_2(%arg0: i32) -> (i32, i32) {
    %c0_i32 = arith.constant 0 : i32
    %c0_i32_0 = arith.constant 0 : i32
    %c0_i32_1 = arith.constant 0 : i32
    return %c0_i32, %c0_i32_0 : i32, i32
  }
  func.func @transform_3(%arg0: i32) -> (i32, i32) {
    %c0_i32 = arith.constant 0 : i32
    %c0_i32_0 = arith.constant 0 : i32
    %c0_i32_1 = arith.constant 0 : i32
    return %c0_i32, %c0_i32_0 : i32, i32
  }
  func.func @transform_4(%arg0: i32) -> (i32, i32) {
    %c0_i32 = arith.constant 0 : i32
    %c0_i32_0 = arith.constant 0 : i32
    %c0_i32_1 = arith.constant 0 : i32
    return %c0_i32, %c0_i32_0 : i32, i32
  }
  func.func @transform_5(%arg0: i32) -> (i32, i32) {
    %c0_i32 = arith.constant 0 : i32
    %c0_i32_0 = arith.constant 0 : i32
    return %arg0, %c0_i32 : i32, i32
  }
}

</mosaic_0001>

<llo_original>
// kernel: tpu_custom_call.1
$region0: #{tpu_custom_call.1}
  #allocation0 [shape = 'u32[]', space=smem, size = 0x4, offset = 0x4, fixed_abs, tag = 'smem constant byte address 0x4 - core index']
  #allocation1 [shape = 'u32[144,128]{1,0:T(1,128)}', space=vmem, size = 0x12000, scoped, tag = 'internal scratch']
  %s0 = inlined_call_operand.vmem [shape: f32[16,6], index: 0, kind: input, shape index: {}]
  %s1 = inlined_call_operand.vmem [shape: f32[6,24], index: 1, kind: input, shape index: {}]
  %s2 = inlined_call_operand.vmem [shape: f32[1,24], index: 2, kind: input, shape index: {}]
  %s3 = inlined_call_operand.vmem [shape: f32[24,6], index: 3, kind: input, shape index: {}]
  %s4 = inlined_call_operand.vmem [shape: f32[1,6], index: 4, kind: input, shape index: {}]
  %s5 = inlined_call_operand.vmem [shape: f32[16,6], index: 5, kind: output, shape index: {}]
  %s6 = sld [smem:[#allocation0]]
  $region53: #{tpu_custom_call.1} parent=0
    _
  %s8 = ssub.s32 1, %s6
  %s9 = scalar_select 0, %s8, %s6
  loop: start=0, step=1, limit=4
  $region2: #{tpu_custom_call.1} parent=0 // loop_pre_header
    _
  $region3: #{tpu_custom_call.1} parent=0 // loop_header
    %s11 = sphi 0, %s15
    %p12 = scmp.ge.s32.totalorder %s11, 4
    %s21 = sphi 0, %s23
    %s24 = sphi 0, %s21
    %s25 = sphi 0, %s24
    %s41 = sphi 0, %s25
    %s45 = sphi 0, %s45
    %s47 = sphi 0, %s45
    %s48 = sphi 0, %s47
    %s62 = sphi 0, %s48
    %s66 = sphi 0, %s66
    %s68 = sphi 0, %s66
    %s69 = sphi 0, %s68
    %s83 = sphi 0, %s69
    %s87 = sphi 0, %s87
    %s89 = sphi 0, %s87
    %s90 = sphi 0, %s89
    %s104 = sphi 0, %s90
    %s108 = sphi 0, %s108
    %s110 = sphi 0, %s108
    %s111 = sphi 0, %s110
    %s125 = sphi 0, %s111
    %s131 = sphi 0, %s133
    %s134 = sphi 0, %s131
    %s135 = sphi 0, %s134
    %s151 = sphi 0, %s135
  $region4: #{tpu_custom_call.1} parent=0 // loop_header_branch
    %14 = sbr.rel (%p12) target = $region8
  $region5: #{tpu_custom_call.1} parent=0 // loop_body
    %s16 = ssub.s32 %s11, 1
    %s17 = ssub.s32 %s11, 2
    %s18 = sadd.s32 %s11, 1
    %s19 = ssub.s32 %s11, %s18
    %p20 = scmp.eq.s32.totalorder %s19, 0
    %s22 = sadd.s32 %s21, 1
    %s23 = scalar_select %p20, %s21, %s22
    %p26 = pneg %p20
    %p27 = scmp.eq.s32.totalorder %s11, 1
    %p28 = por %p26, %p27
    %p29 = scmp.ne.s32.totalorder %s21, %s24
    %p30 = scmp.eq.s32.totalorder %s11, 0
    %p31 = por %p29, %p30
    %p32 = scmp.ne.s32.totalorder %s21, %s24
    %p33 = scmp.eq.s32.totalorder %s16, 1
    %p34 = por %p32, %p33
    %p35 = scmp.ne.s32.totalorder %s24, %s25
    %p36 = scmp.eq.s32.totalorder %s16, 0
    %p37 = por %p35, %p36
    %p38 = scmp.ne.s32.totalorder %s24, %s25
    %p39 = scmp.eq.s32.totalorder %s17, 1
    %p40 = por %p38, %p39
    %p42 = scmp.ne.s32.totalorder %s25, %s41
    %p43 = scmp.eq.s32.totalorder %s17, 0
    %p44 = por %p42, %p43
    %s46 = sadd.s32 %s45, 1
    %p49 = scmp.eq.s32.totalorder %s11, 1
    %p50 = scmp.ne.s32.totalorder %s45, %s47
    %p51 = scmp.eq.s32.totalorder %s11, 0
    %p52 = por %p50, %p51
    %p53 = scmp.ne.s32.totalorder %s45, %s47
    %p54 = scmp.eq.s32.totalorder %s16, 1
    %p55 = por %p53, %p54
    %p56 = scmp.ne.s32.totalorder %s47, %s48
    %p57 = scmp.eq.s32.totalorder %s16, 0
    %p58 = por %p56, %p57
    %p59 = scmp.ne.s32.totalorder %s47, %s48
    %p60 = scmp.eq.s32.totalorder %s17, 1
    %p61 = por %p59, %p60
    %p63 = scmp.ne.s32.totalorder %s48, %s62
    %p64 = scmp.eq.s32.totalorder %s17, 0
    %p65 = por %p63, %p64
    %s67 = sadd.s32 %s66, 1
    %p70 = scmp.eq.s32.totalorder %s11, 1
    %p71 = scmp.ne.s32.totalorder %s66, %s68
    %p72 = scmp.eq.s32.totalorder %s11, 0
    %p73 = por %p71, %p72
    %p74 = scmp.ne.s32.totalorder %s66, %s68
    %p75 = scmp.eq.s32.totalorder %s16, 1
    %p76 = por %p74, %p75
    %p77 = scmp.ne.s32.totalorder %s68, %s69
    %p78 = scmp.eq.s32.totalorder %s16, 0
    %p79 = por %p77, %p78
    %p80 = scmp.ne.s32.totalorder %s68, %s69
    %p81 = scmp.eq.s32.totalorder %s17, 1
    %p82 = por %p80, %p81
    %p84 = scmp.ne.s32.totalorder %s69, %s83
    %p85 = scmp.eq.s32.totalorder %s17, 0
    %p86 = por %p84, %p85
    %s88 = sadd.s32 %s87, 1
    %p91 = scmp.eq.s32.totalorder %s11, 1
    %p92 = scmp.ne.s32.totalorder %s87, %s89
    %p93 = scmp.eq.s32.totalorder %s11, 0
    %p94 = por %p92, %p93
    %p95 = scmp.ne.s32.totalorder %s87, %s89
    %p96 = scmp.eq.s32.totalorder %s16, 1
    %p97 = por %p95, %p96
    %p98 = scmp.ne.s32.totalorder %s89, %s90
    %p99 = scmp.eq.s32.totalorder %s16, 0
    %p100 = por %p98, %p99
    %p101 = scmp.ne.s32.totalorder %s89, %s90
    %p102 = scmp.eq.s32.totalorder %s17, 1
    %p103 = por %p101, %p102
    %p105 = scmp.ne.s32.totalorder %s90, %s104
    %p106 = scmp.eq.s32.totalorder %s17, 0
    %p107 = por %p105, %p106
    %s109 = sadd.s32 %s108, 1
    %p112 = scmp.eq.s32.totalorder %s11, 1
    %p113 = scmp.ne.s32.totalorder %s108, %s110
    %p114 = scmp.eq.s32.totalorder %s11, 0
    %p115 = por %p113, %p114
    %p116 = scmp.ne.s32.totalorder %s108, %s110
    %p117 = scmp.eq.s32.totalorder %s16, 1
    %p118 = por %p116, %p117
    %p119 = scmp.ne.s32.totalorder %s110, %s111
    %p120 = scmp.eq.s32.totalorder %s16, 0
    %p121 = por %p119, %p120
    %p122 = scmp.ne.s32.totalorder %s110, %s111
    %p123 = scmp.eq.s32.totalorder %s17, 1
    %p124 = por %p122, %p123
    %p126 = scmp.ne.s32.totalorder %s111, %s125
    %p127 = scmp.eq.s32.totalorder %s17, 0
    %p128 = por %p126, %p127
    %s129 = ssub.s32 %s11, %s18
    %p130 = scmp.eq.s32.totalorder %s129, 0
    %s132 = sadd.s32 %s131, 1
    %s133 = scalar_select %p130, %s131, %s132
    %p136 = pneg %p130
    %p137 = scmp.eq.s32.totalorder %s11, 1
    %p138 = por %p136, %p137
    %p139 = scmp.ne.s32.totalorder %s131, %s134
    %p140 = scmp.eq.s32.totalorder %s11, 0
    %p141 = por %p139, %p140
    %p142 = scmp.ne.s32.totalorder %s131, %s134
    %p143 = scmp.eq.s32.totalorder %s16, 1
    %p144 = por %p142, %p143
    %p145 = scmp.ne.s32.totalorder %s134, %s135
    %p146 = scmp.eq.s32.totalorder %s16, 0
    %p147 = por %p145, %p146
    %p148 = scmp.ne.s32.totalorder %s134, %s135
    %p149 = scmp.eq.s32.totalorder %s17, 1
    %p150 = por %p148, %p149
    %p152 = scmp.ne.s32.totalorder %s135, %s151
    %p153 = scmp.eq.s32.totalorder %s17, 0
    %p154 = por %p152, %p153
    %p155 = scmp.le.s32.totalorder 1, %s11
    %p156 = scmp.lt.s32.totalorder %s11, 3
    %p157 = pnand %p155, %p156
    %p158 = pneg %p157
    // Predicated region
    $region9: #{tpu_custom_call.1} parent=5 // pred_check
      _
    $region10: #{tpu_custom_call.1} parent=5 // pred_check_branch
      %160 = sbr.rel (%p157) target = $region12
    $region11: #{tpu_custom_call.1} parent=5 // pred_region
      %s161 = ssub.s32 %s11, 1
      // Predicated region
      $region13: #{tpu_custom_call.1} parent=11 // pred_check
        %p162 = pneg %p58
      $region14: #{tpu_custom_call.1} parent=11 // pred_check_branch
        %164 = sbr.rel (%p162) target = $region16
      $region15: #{tpu_custom_call.1} parent=11 // pred_region
        _
      $region16: #{tpu_custom_call.1} parent=11 // pred_fallthru
        _
      // Predicated region
      $region17: #{tpu_custom_call.1} parent=11 // pred_check
        %p165 = pneg %p79
      $region18: #{tpu_custom_call.1} parent=11 // pred_check_branch
        %167 = sbr.rel (%p165) target = $region20
      $region19: #{tpu_custom_call.1} parent=11 // pred_region
        _
      $region20: #{tpu_custom_call.1} parent=11 // pred_fallthru
        _
      // Predicated region
      $region21: #{tpu_custom_call.1} parent=11 // pred_check
        %p168 = pneg %p100
      $region22: #{tpu_custom_call.1} parent=11 // pred_check_branch
        %170 = sbr.rel (%p168) target = $region24
      $region23: #{tpu_custom_call.1} parent=11 // pred_region
        _
      $region24: #{tpu_custom_call.1} parent=11 // pred_fallthru
        _
      // Predicated region
      $region25: #{tpu_custom_call.1} parent=11 // pred_check
        %p171 = pneg %p121
      $region26: #{tpu_custom_call.1} parent=11 // pred_check_branch
        %173 = sbr.rel (%p171) target = $region28
      $region27: #{tpu_custom_call.1} parent=11 // pred_region
        _
      $region28: #{tpu_custom_call.1} parent=11 // pred_fallthru
        _
    $region12: #{tpu_custom_call.1} parent=5 // pred_fallthru
      _
    %p174 = scmp.lt.s32.totalorder %s11, 2
    // Predicated region
    $region29: #{tpu_custom_call.1} parent=5 // pred_check
      %p175 = pneg %p174
    $region30: #{tpu_custom_call.1} parent=5 // pred_check_branch
      %177 = sbr.rel (%p175) target = $region32
    $region31: #{tpu_custom_call.1} parent=5 // pred_region
      // Predicated region
      $region33: #{tpu_custom_call.1} parent=31 // pred_check
        %p178 = pneg %p31
      $region34: #{tpu_custom_call.1} parent=31 // pred_check_branch
        %180 = sbr.rel (%p178) target = $region36
      $region35: #{tpu_custom_call.1} parent=31 // pred_region
        %p181 = scmp.lt.s32.totalorder %s11, 1
        %s182 = scalar_select %p181, %s11, 1
        %s183 = smul.addr %s182, 8
        %s184 = scalar_lea.vmem %s0, %s183
      $region36: #{tpu_custom_call.1} parent=31 // pred_fallthru
        _
    $region32: #{tpu_custom_call.1} parent=5 // pred_fallthru
      _
    %p185 = scmp.le.s32.totalorder 1, %s11
    %p186 = scmp.lt.s32.totalorder %s11, 3
    %p187 = pnand %p185, %p186
    %p188 = pneg %p187
    // Predicated region
    $region37: #{tpu_custom_call.1} parent=5 // pred_check
      _
    $region38: #{tpu_custom_call.1} parent=5 // pred_check_branch
      %190 = sbr.rel (%p187) target = $region40
    $region39: #{tpu_custom_call.1} parent=5 // pred_region
      %s191 = ssub.s32 %s11, 1
      %p192 = scmp.lt.s32.totalorder %s16, 1
      %s193 = scalar_select %p192, %s16, 1
      %s194 = smul.addr %s193, 8
      %s195 = scalar_lea.vmem %s0, %s194
      %p196 = pneg %p37
      %p197 = pneg %p34
      %p198 = pneg %p58
      %p199 = pneg %p55
      %p200 = pneg %p79
      %p201 = pneg %p76
      %p202 = pneg %p100
      %p203 = pneg %p97
      %p204 = pneg %p121
      %p205 = pneg %p118
      %p206 = pneg %p147
      %p207 = pneg %p144
      %p208 = scmp.lt.s32.totalorder %s16, 1
      %s209 = scalar_select %p208, %s16, 1
      %s210 = smul.addr %s209, 8
      %s211 = scalar_lea.vmem %s5, %s210
      %p212 = scmp.lt.s32.totalorder %s16, 1
      %s213 = scalar_select %p212, %s16, 1
      %s214 = smul.addr %s213, 8
      %s215 = scalar_lea.vmem %s0, %s214
      %p216 = scmp.lt.s32.totalorder %s16, 1
      %s217 = scalar_select %p216, %s16, 1
      %s218 = smul.addr %s217, 8
      %s219 = scalar_lea.vmem %s5, %s218
      %v220 = vld [vmem:[%s215] sm:$0xff]
      %v221 = vld [vmem:[%s1] sm:$0x3f]
      %v222 = vld [vmem:[%s2] sm:$0x1]
      %v224 = vlaneseq
      %v225 = vshrl.u32 %v224, 7
      %v226 = vsub.s32 0, %v225
      %v227 = vrot.slane %v222, %v226
      %vm229 = vcmask 48128
      %v231 = vsel %vm229, %v220, 0
      %vm233 = vcmask 1045504
      %v235 = vsel %vm233, %v221, 0
      %237 = vmatprep.subr.mxu0 0.0
      %238 = vmatpush1.msra.mxu0 %v235
      %239 = vmatprep.subr.mxu0 0.0
      %240 = vmatpush1.msra.mxu0 0.0
      %241 = vmatprep.subr.mxu0 0.0
      %242 = vmatpush1.msra.mxu0 0.0
      %243 = vmatprep.subr.mxu0 0.0
      %244 = vmatpush1.msra.mxu0 0.0
      %245 = vmatprep.subr.mxu0 0.0
      %246 = vmatpush1.msra.mxu0 0.0
      %247 = vmatprep.subr.mxu0 0.0
      %248 = vmatpush1.msra.mxu0 0.0
      %249 = vmatprep.subr.mxu0 0.0
      %250 = vmatpush1.msra.mxu0 0.0
      %251 = vmatprep.subr.mxu0 0.0
      %252 = vmatpush1.msra.mxu0 0.0
      %253 = vmatprep.subr.mxu0 0.0
      %254 = vmatpush1.msra.mxu0 0.0
      %255 = vmatprep.subr.mxu0 0.0
      %256 = vmatpush1.msra.mxu0 0.0
      %257 = vmatprep.subr.mxu0 0.0
      %258 = vmatpush1.msra.mxu0 0.0
      %259 = vmatprep.subr.mxu0 0.0
      %260 = vmatpush1.msra.mxu0 0.0
      %261 = vmatprep.subr.mxu0 0.0
      %262 = vmatpush1.msra.mxu0 0.0
      %263 = vmatprep.subr.mxu0 0.0
      %264 = vmatpush1.msra.mxu0 0.0
      %265 = vmatprep.subr.mxu0 0.0
      %266 = vmatpush1.msra.mxu0 0.0
      %267 = vmatprep.subr.mxu0 0.0
      %268 = vmatpush1.msra.mxu0 0.0
      %269 = vmatprep.subr.mxu0 0.0
      %270 = vmatpush1.msra.mxu0 0.0
      %271 = vmatprep.subr.mxu0 0.0
      %272 = vmatpush1.msra.mxu0 0.0
      %273 = vmatprep.subr.mxu0 0.0
      %274 = vmatpush1.msra.mxu0 0.0
      %275 = vmatprep.subr.mxu0 0.0
      %276 = vmatpush1.msra.mxu0 0.0
      %277 = vmatprep.subr.mxu0 0.0
      %278 = vmatpush1.msra.mxu0 0.0
      %279 = vmatprep.subr.mxu0 0.0
      %280 = vmatpush1.msra.mxu0 0.0
      %281 = vmatprep.subr.mxu0 0.0
      %282 = vmatpush1.msra.mxu0 0.0
      %283 = vmatprep.subr.mxu0 0.0
      %284 = vmatpush1.msra.mxu0 0.0
      %285 = vmatprep.subr.mxu0 0.0
      %286 = vmatpush1.msra.mxu0 0.0
      %287 = vmatprep.subr.mxu0 0.0
      %288 = vmatpush1.msra.mxu0 0.0
      %289 = vmatprep.subr.mxu0 0.0
      %290 = vmatpush1.msra.mxu0 0.0
      %291 = vmatprep.subr.mxu0 0.0
      %292 = vmatpush1.msra.mxu0 0.0
      %293 = vmatprep.subr.mxu0 0.0
      %294 = vmatpush1.msra.mxu0 0.0
      %295 = vmatprep.subr.mxu0 0.0
      %296 = vmatpush1.msra.mxu0 0.0
      %297 = vmatprep.subr.mxu0 0.0
      %298 = vmatpush1.msra.mxu0 0.0
      %299 = vmatprep.subr.mxu0 0.0
      %300 = vmatpush1.msra.mxu0 0.0
      %301 = vmatprep.mubr.f32.mxu0 0.0
      %302 = vmatmul.mubr.f32.gmra.mrb[0].mxu0 %v231
      %v303 = vpop.f32.mrb[0].mxu0
      %v304 = vadd.f32 %v227, %v303
      %v305 = vpop.f32.mrb[0].mxu0
      %306 = vdwg.mxu0
      %v307 = vmax.f32 %v304, 0.0
      %v308 = vld [vmem:[%s3] sm:$0xff]
      %v309 = vld [vmem:[%s3 + $0x8] sm:$0xff]
      %v310 = vld [vmem:[%s3 + $0x10] sm:$0xff]
      %v311 = vld [vmem:[%s4] sm:$0x1]
      %v313 = vlaneseq
      %v314 = vshrl.u32 %v313, 7
      %v315 = vsub.s32 0, %v314
      %v316 = vrot.slane %v311, %v315
      %vm318 = vcmask 195584
      %v320 = vsel %vm318, %v307, 0
      %322 = vmatprep.subr.mxu0 0.0
      %323 = vmatpush1.msra.mxu0 %v308
      %324 = vmatprep.subr.mxu0 0.0
      %325 = vmatpush1.msra.mxu0 %v309
      %326 = vmatprep.subr.mxu0 0.0
      %327 = vmatpush1.msra.mxu0 %v310
      %328 = vmatprep.subr.mxu0 0.0
      %329 = vmatpush1.msra.mxu0 0.0
      %330 = vmatprep.subr.mxu0 0.0
      %331 = vmatpush1.msra.mxu0 0.0
      %332 = vmatprep.subr.mxu0 0.0
      %333 = vmatpush1.msra.mxu0 0.0
      %334 = vmatprep.subr.mxu0 0.0
      %335 = vmatpush1.msra.mxu0 0.0
      %336 = vmatprep.subr.mxu0 0.0
      %337 = vmatpush1.msra.mxu0 0.0
      %338 = vmatprep.subr.mxu0 0.0
      %339 = vmatpush1.msra.mxu0 0.0
      %340 = vmatprep.subr.mxu0 0.0
      %341 = vmatpush1.msra.mxu0 0.0
      %342 = vmatprep.subr.mxu0 0.0
      %343 = vmatpush1.msra.mxu0 0.0
      %344 = vmatprep.subr.mxu0 0.0
      %345 = vmatpush1.msra.mxu0 0.0
      %346 = vmatprep.subr.mxu0 0.0
      %347 = vmatpush1.msra.mxu0 0.0
      %348 = vmatprep.subr.mxu0 0.0
      %349 = vmatpush1.msra.mxu0 0.0
      %350 = vmatprep.subr.mxu0 0.0
      %351 = vmatpush1.msra.mxu0 0.0
      %352 = vmatprep.subr.mxu0 0.0
      %353 = vmatpush1.msra.mxu0 0.0
      %354 = vmatprep.subr.mxu0 0.0
      %355 = vmatpush1.msra.mxu0 0.0
      %356 = vmatprep.subr.mxu0 0.0
      %357 = vmatpush1.msra.mxu0 0.0
      %358 = vmatprep.subr.mxu0 0.0
      %359 = vmatpush1.msra.mxu0 0.0
      %360 = vmatprep.subr.mxu0 0.0
      %361 = vmatpush1.msra.mxu0 0.0
      %362 = vmatprep.subr.mxu0 0.0
      %363 = vmatpush1.msra.mxu0 0.0
      %364 = vmatprep.subr.mxu0 0.0
      %365 = vmatpush1.msra.mxu0 0.0
      %366 = vmatprep.subr.mxu0 0.0
      %367 = vmatpush1.msra.mxu0 0.0
      %368 = vmatprep.subr.mxu0 0.0
      %369 = vmatpush1.msra.mxu0 0.0
      %370 = vmatprep.subr.mxu0 0.0
      %371 = vmatpush1.msra.mxu0 0.0
      %372 = vmatprep.subr.mxu0 0.0
      %373 = vmatpush1.msra.mxu0 0.0
      %374 = vmatprep.subr.mxu0 0.0
      %375 = vmatpush1.msra.mxu0 0.0
      %376 = vmatprep.subr.mxu0 0.0
      %377 = vmatpush1.msra.mxu0 0.0
      %378 = vmatprep.subr.mxu0 0.0
      %379 = vmatpush1.msra.mxu0 0.0
      %380 = vmatprep.subr.mxu0 0.0
      %381 = vmatpush1.msra.mxu0 0.0
      %382 = vmatprep.subr.mxu0 0.0
      %383 = vmatpush1.msra.mxu0 0.0
      %384 = vmatprep.subr.mxu0 0.0
      %385 = vmatpush1.msra.mxu0 0.0
      %386 = vmatprep.mubr.f32.mxu0 0.0
      %387 = vmatmul.mubr.f32.gmra.mrb[0].mxu0 %v320
      %v388 = vpop.f32.mrb[0].mxu0
      %v389 = vadd.f32 %v316, %v388
      %v390 = vpop.f32.mrb[0].mxu0
      %391 = vdwg.mxu0
      %392 = vst.msk [vmem:[%s219] sm:$0xff] %vm229, %v389
      %p393 = scmp.lt.s32.totalorder %s16, 1
      %s394 = scalar_select %p393, %s16, 1
      %s395 = smul.addr %s394, 8
      %s396 = scalar_lea.vmem %s5, %s395
      // Predicated region
      $region41: #{tpu_custom_call.1} parent=39 // pred_check
        %p397 = pneg %p144
      $region42: #{tpu_custom_call.1} parent=39 // pred_check_branch
        %399 = sbr.rel (%p397) target = $region44
      $region43: #{tpu_custom_call.1} parent=39 // pred_region
        _
      $region44: #{tpu_custom_call.1} parent=39 // pred_fallthru
        _
    $region40: #{tpu_custom_call.1} parent=5 // pred_fallthru
      _
    %p400 = scmp.le.s32.totalorder 2, %s11
    // Predicated region
    $region45: #{tpu_custom_call.1} parent=5 // pred_check
      %p401 = pneg %p400
    $region46: #{tpu_custom_call.1} parent=5 // pred_check_branch
      %403 = sbr.rel (%p401) target = $region48
    $region47: #{tpu_custom_call.1} parent=5 // pred_region
      %s404 = ssub.s32 %s11, 2
      // Predicated region
      $region49: #{tpu_custom_call.1} parent=47 // pred_check
        %p405 = pneg %p150
      $region50: #{tpu_custom_call.1} parent=47 // pred_check_branch
        %407 = sbr.rel (%p405) target = $region52
      $region51: #{tpu_custom_call.1} parent=47 // pred_region
        %p408 = scmp.lt.s32.totalorder %s17, 1
        %s409 = scalar_select %p408, %s17, 1
        %s410 = smul.addr %s409, 8
        %s411 = scalar_lea.vmem %s5, %s410
      $region52: #{tpu_custom_call.1} parent=47 // pred_fallthru
        _
    $region48: #{tpu_custom_call.1} parent=5 // pred_fallthru
      _
  $region6: #{tpu_custom_call.1} parent=0 // loop_footer
    %s15 = sadd.s32 1, %s11
  $region7: #{tpu_custom_call.1} parent=0 // loop_footer_branch
    %10 = sbr.rel target = $region3
  $region8: #{tpu_custom_call.1} parent=0 // loop_exit
    _

</llo_original>
